<compile_context>
chip_gen: v7x
topology: tpu7x:2x2x1
jax: 0.10.0
libtpu: 0.0.40
codegen_flags: <defaults>
</compile_context>

<pallas_src>
import jax
import jax.numpy as jnp
from jax.experimental import pallas as pl
from jax.experimental.pallas import tpu as pltpu

BN_EPS = 1e-5
OUT_PAD = 128                      # lane-dense output width (col 0 is the real output)
_VMEM_TILE_BUDGET = 24 * 1024 * 1024   # conservative: fits 32 MiB scoped VMEM (v6e/v7x)


def _sigmoid(x):
    # sigmoid(x) == 0.5 * (1 + tanh(x / 2)); tanh runs on the EUP slot.
    return 0.5 * (jnp.tanh(0.5 * x) + 1.0)


def _round_up(a, b):
    return (a + b - 1) // b * b


def _fold_bn(w, b, gamma, beta, mean, var, eps=BN_EPS):
    """Fold eval-mode BatchNorm1d into the preceding Linear (exact)."""
    scale = gamma / jnp.sqrt(var + eps)          # (1, H)
    w_f = w * scale                              # (in, H) * (1, H)
    b_f = (b - mean) * scale + beta              # (1, H)
    return w_f, b_f


def _choose_tile_n(N, F, H1p, H2p, act_bytes):
    """Largest row tile that fits the VMEM budget (double-buffered x/out)."""
    # Resident weights + biases (assume double-buffered to be safe).
    fixed = 2 * act_bytes * (F * H1p + H1p * H2p + H2p * OUT_PAD)
    fixed += 2 * 4 * (H1p + H2p + OUT_PAD)
    tile = 8
    for cand in (2048, 1024, 512, 256, 128, 64, 32, 16, 8):
        need = fixed
        need += 2 * cand * F * act_bytes           # x (double-buffered)
        need += 2 * cand * OUT_PAD * 4             # out (double-buffered, f32)
        need += cand * (H1p + H2p + OUT_PAD) * 4   # f32 intermediates (rough)
        if need <= _VMEM_TILE_BUDGET:
            tile = cand
            break
    # Prefer >= 2 grid steps so the "parallel" axis can shard across the two
    # TensorCores on v7x (and give the pipeline something to overlap).
    if tile >= N:
        if N >= 16:
            tile = _round_up((N + 1) // 2, 8)
        else:
            tile = _round_up(max(N, 1), 8)
    return tile


# ----------------------------- kernel ---------------------------------------


def mil_elasticnet_kernel(x_ref, w1_ref, b1_ref, w2_ref, b2_ref, w3_ref, b3_ref,
                          o_ref):
    # Layer 1 (BN already folded into w1/b1): matmul (MXU, f32 acc) + bias + sigmoid.
    h = jnp.dot(x_ref[...], w1_ref[...], preferred_element_type=jnp.float32)
    h = _sigmoid(h + b1_ref[...])

    # Layer 2 (BN folded).
    h = jnp.dot(h.astype(w2_ref.dtype), w2_ref[...],
                preferred_element_type=jnp.float32)
    h = _sigmoid(h + b2_ref[...])

    # Output layer, padded to 128 lanes for MXU/store efficiency (col 0 real).
    out = jnp.dot(h.astype(w3_ref.dtype), w3_ref[...],
                  preferred_element_type=jnp.float32)
    o_ref[...] = _sigmoid(out + b3_ref[...]).astype(o_ref.dtype)


# ----------------------------- wrapper ---------------------------------------


def mil_elasticnet_forward(x, params, *, compute_dtype=jnp.bfloat16, tile_n=None):
    """x: [N, F] float32. params: dict of weights (see init_params)."""
    N, F = x.shape
    H1 = params["w1"].shape[1]
    H2 = params["w2"].shape[1]
    H1p = _round_up(H1, 128)
    H2p = _round_up(H2, 128)

    # ---- fold eval-mode BatchNorm into the linear layers (exact) ----
    w1f, b1f = _fold_bn(params["w1"], params["b1"], params["g1"], params["be1"],
                        params["m1"], params["v1"])
    w2f, b2f = _fold_bn(params["w2"], params["b2"], params["g2"], params["be2"],
                        params["m2"], params["v2"])
    w3, b3 = params["w3"], params["b3"]

    # ---- zero-pad hidden/output dims to 128 lanes (exact: padded units have
    #      zero weights on both sides, so they contribute nothing) ----
    w1p = jnp.zeros((F, H1p), jnp.float32).at[:, :H1].set(w1f).astype(compute_dtype)
    b1p = jnp.zeros((1, H1p), jnp.float32).at[:, :H1].set(b1f)
    w2p = jnp.zeros((H1p, H2p), jnp.float32).at[:H1, :H2].set(w2f).astype(compute_dtype)
    b2p = jnp.zeros((1, H2p), jnp.float32).at[:, :H2].set(b2f)
    w3p = jnp.zeros((H2p, OUT_PAD), jnp.float32).at[:H2, :1].set(w3).astype(compute_dtype)
    b3p = jnp.zeros((1, OUT_PAD), jnp.float32).at[:, :1].set(b3)

    act_bytes = jnp.dtype(compute_dtype).itemsize
    if tile_n is None:
        tile_n = _choose_tile_n(N, F, H1p, H2p, act_bytes)
    tile_n = max(8, _round_up(int(tile_n), 8))
    N_pad = _round_up(N, tile_n)

    x_p = x.astype(compute_dtype)
    if N_pad != N:
        x_p = jnp.pad(x_p, ((0, N_pad - N), (0, 0)))

    grid = (N_pad // tile_n,)

    def full2(shape):
        return pl.BlockSpec(shape, lambda i: (0, 0))

    in_specs = [
        pl.BlockSpec((tile_n, F), lambda i: (i, 0)),    # x tile
        full2((F, H1p)), full2((1, H1p)),               # layer1 (BN folded)
        full2((H1p, H2p)), full2((1, H2p)),             # layer2 (BN folded)
        full2((H2p, OUT_PAD)), full2((1, OUT_PAD)),     # output layer (padded)
    ]
    out_spec = pl.BlockSpec((tile_n, OUT_PAD), lambda i: (i, 0))

    flops = 2 * N_pad * (F * H1p + H1p * H2p + H2p * OUT_PAD)
    transcendentals = N_pad * (H1p + H2p + OUT_PAD)
    bytes_accessed = (N_pad * F * act_bytes
                      + (F * H1p + H1p * H2p + H2p * OUT_PAD) * act_bytes
                      + (H1p + H2p + OUT_PAD) * 4
                      + N_pad * OUT_PAD * 4)

    f = pl.pallas_call(
        mil_elasticnet_kernel,
        out_shape=jax.ShapeDtypeStruct((N_pad, OUT_PAD), jnp.float32),
        grid_spec=pltpu.PrefetchScalarGridSpec(
            num_scalar_prefetch=0,
            grid=grid,
            in_specs=in_specs,
            out_specs=out_spec,
        ),
        compiler_params=pltpu.CompilerParams(
            dimension_semantics=("parallel",),
            vmem_limit_bytes=32 * 1024 * 1024,
        ),
        cost_estimate=pl.CostEstimate(
            flops=flops,
            transcendentals=transcendentals,
            bytes_accessed=bytes_accessed,
        ),
    )
    out = f(x_p, w1p, b1p, w2p, b2p, w3p, b3p)
    return out[:N, :1]


# ----------------------------- test harness ----------------------------------


def init_params(key, input_size, h1, h2):
    """Deterministic synthetic params. Linear weights stored [in, out]."""
    ks = jax.random.split(key, 8)

    def linear_init(kw, kb, fan_in, fan_out):
        bound = 1.0 / jnp.sqrt(fan_in)
        w = jax.random.uniform(kw, (fan_in, fan_out), jnp.float32, -bound, bound)
        b = jax.random.uniform(kb, (1, fan_out), jnp.float32, -bound, bound)
        return w, b

    w1, b1 = linear_init(ks[0], ks[1], input_size, h1)
    w2, b2 = linear_init(ks[2], ks[3], h1, h2)
    w3, b3 = linear_init(ks[4], ks[5], h2, 1)

    # BatchNorm1d params (perturbed slightly so the BN math is exercised).
    m1 = 0.1 * jax.random.normal(ks[6], (1, h1), jnp.float32)
    v1 = jnp.ones((1, h1), jnp.float32) + 0.05
    g1 = jnp.ones((1, h1), jnp.float32)
    be1 = jnp.zeros((1, h1), jnp.float32)

    m2 = 0.1 * jax.random.normal(ks[7], (1, h2), jnp.float32)
    v2 = jnp.ones((1, h2), jnp.float32) + 0.05
    g2 = jnp.ones((1, h2), jnp.float32)
    be2 = jnp.zeros((1, h2), jnp.float32)

    return dict(
        w1=w1, b1=b1, g1=g1, be1=be1, m1=m1, v1=v1,
        w2=w2, b2=b2, g2=g2, be2=be2, m2=m2, v2=v2,
        w3=w3, b3=b3,
    )


def reference_forward(x, p):
    """Pure-JAX reference matching the PyTorch forward (eval-mode BN)."""
    h = x @ p["w1"] + p["b1"]
    h = (h - p["m1"]) / jnp.sqrt(p["v1"] + BN_EPS) * p["g1"] + p["be1"]
    h = jax.nn.sigmoid(h)
    h = h @ p["w2"] + p["b2"]
    h = (h - p["m2"]) / jnp.sqrt(p["v2"] + BN_EPS) * p["g2"] + p["be2"]
    h = jax.nn.sigmoid(h)
    h = h @ p["w3"] + p["b3"]
    return jax.nn.sigmoid(h)


if __name__ == "__main__":
    key = jax.random.PRNGKey(0)
    k_x, k_p = jax.random.split(key)

    N, input_size, h1, h2 = 8, 16, 32, 16
    x = jax.random.normal(k_x, (N, input_size), jnp.float32)
    params = init_params(k_p, input_size, h1, h2)

    ref = reference_forward(x, params)

    # f32 path: exact (tight tolerance).
    out_f32 = jax.block_until_ready(
        mil_elasticnet_forward(x, params, compute_dtype=jnp.float32))
    assert out_f32.shape == (N, 1)
    assert jnp.allclose(out_f32, ref, atol=5e-5, rtol=5e-5), (out_f32, ref)

    # bf16 path (default): halves x HBM traffic, doubles MXU rate; looser tol.
    out_bf16 = jax.block_until_ready(mil_elasticnet_forward(x, params))
    assert out_bf16.shape == (N, 1)
    assert jnp.allclose(out_bf16, ref, atol=2e-2, rtol=2e-2), (out_bf16, ref)

    # Ragged batch (exercises row padding + multi-step grid).
    N2 = 21
    x2 = jax.random.normal(jax.random.PRNGKey(1), (N2, input_size), jnp.float32)
    out2 = jax.block_until_ready(mil_elasticnet_forward(x2, params))
    ref2 = reference_forward(x2, params)
    assert out2.shape == (N2, 1)
    assert jnp.allclose(out2, ref2, atol=2e-2, rtol=2e-2), (out2, ref2)

    print("KERNEL_OK")
</pallas_src>

<mosaic_0001>
module attributes {stable_mosaic.version = 11 : i64} {
  func.func @mil_elasticnet_kernel(%arg0: i32, %arg1: memref<8x16xf32, #tpu.memory_space<vmem>>, %arg2: memref<16x128xf32, #tpu.memory_space<vmem>>, %arg3: memref<1x128xf32, #tpu.memory_space<vmem>>, %arg4: memref<128x128xf32, #tpu.memory_space<vmem>>, %arg5: memref<1x128xf32, #tpu.memory_space<vmem>>, %arg6: memref<128x128xf32, #tpu.memory_space<vmem>>, %arg7: memref<1x128xf32, #tpu.memory_space<vmem>>, %arg8: memref<8x128xf32, #tpu.memory_space<vmem>>) attributes {dimension_semantics = [#tpu.dimension_semantics<parallel>], iteration_bounds = array<i64: 1>, scalar_prefetch = 0 : i64, scratch_operands = 0 : i64, tpu.core_type = #tpu.core_type<tc>, window_params = [{transform_indices = @transform_0, window_bounds = array<i64: 8, 16>}, {pipeline_mode = #tpu.pipeline_mode<synchronous>, transform_indices = @transform_1, window_bounds = array<i64: 16, 128>}, {pipeline_mode = #tpu.pipeline_mode<synchronous>, transform_indices = @transform_2, window_bounds = array<i64: 1, 128>}, {pipeline_mode = #tpu.pipeline_mode<synchronous>, transform_indices = @transform_3, window_bounds = array<i64: 128, 128>}, {pipeline_mode = #tpu.pipeline_mode<synchronous>, transform_indices = @transform_4, window_bounds = array<i64: 1, 128>}, {pipeline_mode = #tpu.pipeline_mode<synchronous>, transform_indices = @transform_5, window_bounds = array<i64: 128, 128>}, {pipeline_mode = #tpu.pipeline_mode<synchronous>, transform_indices = @transform_6, window_bounds = array<i64: 1, 128>}, {transform_indices = @transform_7, window_bounds = array<i64: 8, 128>}]} {
    %c0 = arith.constant 0 : index
    %c0_0 = arith.constant 0 : index
    %0 = vector.load %arg1[%c0, %c0_0] : memref<8x16xf32, #tpu.memory_space<vmem>>, vector<8x16xf32>
    %c0_1 = arith.constant 0 : index
    %c0_2 = arith.constant 0 : index
    %1 = vector.load %arg2[%c0_1, %c0_2] : memref<16x128xf32, #tpu.memory_space<vmem>>, vector<16x128xf32>
    %cst = arith.constant dense<0.000000e+00> : vector<8x128xf32>
    %2 = tpu.matmul %0, %1, %cst {dimension_numbers = #tpu.dot_dimension_numbers<[1], [0], [0], [1], [0, 0, 1, 1], [], []>} : vector<8x16xf32>, vector<16x128xf32>, vector<8x128xf32> -> vector<8x128xf32>
    %c0_3 = arith.constant 0 : index
    %c0_4 = arith.constant 0 : index
    %3 = vector.load %arg3[%c0_3, %c0_4] : memref<1x128xf32, #tpu.memory_space<vmem>>, vector<1x128xf32>
    %4 = vector.broadcast %3 : vector<1x128xf32> to vector<8x128xf32>
    %5 = arith.addf %2, %4 : vector<8x128xf32>
    %cst_5 = arith.constant 5.000000e-01 : f32
    %6 = vector.broadcast %cst_5 : f32 to vector<8x128xf32>
    %7 = arith.mulf %6, %5 : vector<8x128xf32>
    %8 = math.tanh %7 : vector<8x128xf32>
    %cst_6 = arith.constant 1.000000e+00 : f32
    %9 = vector.broadcast %cst_6 : f32 to vector<8x128xf32>
    %10 = arith.addf %8, %9 : vector<8x128xf32>
    %cst_7 = arith.constant 5.000000e-01 : f32
    %11 = vector.broadcast %cst_7 : f32 to vector<8x128xf32>
    %12 = arith.mulf %11, %10 : vector<8x128xf32>
    %c0_8 = arith.constant 0 : index
    %c0_9 = arith.constant 0 : index
    %13 = vector.load %arg4[%c0_8, %c0_9] : memref<128x128xf32, #tpu.memory_space<vmem>>, vector<128x128xf32>
    %cst_10 = arith.constant dense<0.000000e+00> : vector<8x128xf32>
    %14 = tpu.matmul %12, %13, %cst_10 {dimension_numbers = #tpu.dot_dimension_numbers<[1], [0], [0], [1], [0, 0, 1, 1], [], []>} : vector<8x128xf32>, vector<128x128xf32>, vector<8x128xf32> -> vector<8x128xf32>
    %c0_11 = arith.constant 0 : index
    %c0_12 = arith.constant 0 : index
    %15 = vector.load %arg5[%c0_11, %c0_12] : memref<1x128xf32, #tpu.memory_space<vmem>>, vector<1x128xf32>
    %16 = vector.broadcast %15 : vector<1x128xf32> to vector<8x128xf32>
    %17 = arith.addf %14, %16 : vector<8x128xf32>
    %cst_13 = arith.constant 5.000000e-01 : f32
    %18 = vector.broadcast %cst_13 : f32 to vector<8x128xf32>
    %19 = arith.mulf %18, %17 : vector<8x128xf32>
    %20 = math.tanh %19 : vector<8x128xf32>
    %cst_14 = arith.constant 1.000000e+00 : f32
    %21 = vector.broadcast %cst_14 : f32 to vector<8x128xf32>
    %22 = arith.addf %20, %21 : vector<8x128xf32>
    %cst_15 = arith.constant 5.000000e-01 : f32
    %23 = vector.broadcast %cst_15 : f32 to vector<8x128xf32>
    %24 = arith.mulf %23, %22 : vector<8x128xf32>
    %c0_16 = arith.constant 0 : index
    %c0_17 = arith.constant 0 : index
    %25 = vector.load %arg6[%c0_16, %c0_17] : memref<128x128xf32, #tpu.memory_space<vmem>>, vector<128x128xf32>
    %cst_18 = arith.constant dense<0.000000e+00> : vector<8x128xf32>
    %26 = tpu.matmul %24, %25, %cst_18 {dimension_numbers = #tpu.dot_dimension_numbers<[1], [0], [0], [1], [0, 0, 1, 1], [], []>} : vector<8x128xf32>, vector<128x128xf32>, vector<8x128xf32> -> vector<8x128xf32>
    %c0_19 = arith.constant 0 : index
    %c0_20 = arith.constant 0 : index
    %27 = vector.load %arg7[%c0_19, %c0_20] : memref<1x128xf32, #tpu.memory_space<vmem>>, vector<1x128xf32>
    %28 = vector.broadcast %27 : vector<1x128xf32> to vector<8x128xf32>
    %29 = arith.addf %26, %28 : vector<8x128xf32>
    %cst_21 = arith.constant 5.000000e-01 : f32
    %30 = vector.broadcast %cst_21 : f32 to vector<8x128xf32>
    %31 = arith.mulf %30, %29 : vector<8x128xf32>
    %32 = math.tanh %31 : vector<8x128xf32>
    %cst_22 = arith.constant 1.000000e+00 : f32
    %33 = vector.broadcast %cst_22 : f32 to vector<8x128xf32>
    %34 = arith.addf %32, %33 : vector<8x128xf32>
    %cst_23 = arith.constant 5.000000e-01 : f32
    %35 = vector.broadcast %cst_23 : f32 to vector<8x128xf32>
    %36 = arith.mulf %35, %34 : vector<8x128xf32>
    %c0_24 = arith.constant 0 : index
    %c0_25 = arith.constant 0 : index
    %37 = vector.load %arg8[%c0_24, %c0_25] : memref<8x128xf32, #tpu.memory_space<vmem>>, vector<8x128xf32>
    tpu.vector_store %arg8[%c0_24, %c0_25], %36 {strides = array<i32>} : memref<8x128xf32, #tpu.memory_space<vmem>>, vector<8x128xf32>,
    return
  }
  func.func @transform_0(%arg0: i32) -> (i32, i32) {
    %c0_i32 = arith.constant 0 : i32
    %c0_i32_0 = arith.constant 0 : i32
    return %arg0, %c0_i32 : i32, i32
  }
  func.func @transform_1(%arg0: i32) -> (i32, i32) {
    %c0_i32 = arith.constant 0 : i32
    %c0_i32_0 = arith.constant 0 : i32
    %c0_i32_1 = arith.constant 0 : i32
    return %c0_i32, %c0_i32_0 : i32, i32
  }
  func.func @transform_2(%arg0: i32) -> (i32, i32) {
    %c0_i32 = arith.constant 0 : i32
    %c0_i32_0 = arith.constant 0 : i32
    %c0_i32_1 = arith.constant 0 : i32
    return %c0_i32, %c0_i32_0 : i32, i32
  }
  func.func @transform_3(%arg0: i32) -> (i32, i32) {
    %c0_i32 = arith.constant 0 : i32
    %c0_i32_0 = arith.constant 0 : i32
    %c0_i32_1 = arith.constant 0 : i32
    return %c0_i32, %c0_i32_0 : i32, i32
  }
  func.func @transform_4(%arg0: i32) -> (i32, i32) {
    %c0_i32 = arith.constant 0 : i32
    %c0_i32_0 = arith.constant 0 : i32
    %c0_i32_1 = arith.constant 0 : i32
    return %c0_i32, %c0_i32_0 : i32, i32
  }
  func.func @transform_5(%arg0: i32) -> (i32, i32) {
    %c0_i32 = arith.constant 0 : i32
    %c0_i32_0 = arith.constant 0 : i32
    %c0_i32_1 = arith.constant 0 : i32
    return %c0_i32, %c0_i32_0 : i32, i32
  }
  func.func @transform_6(%arg0: i32) -> (i32, i32) {
    %c0_i32 = arith.constant 0 : i32
    %c0_i32_0 = arith.constant 0 : i32
    %c0_i32_1 = arith.constant 0 : i32
    return %c0_i32, %c0_i32_0 : i32, i32
  }
  func.func @transform_7(%arg0: i32) -> (i32, i32) {
    %c0_i32 = arith.constant 0 : i32
    %c0_i32_0 = arith.constant 0 : i32
    return %arg0, %c0_i32 : i32, i32
  }
}

</mosaic_0001>

<llo_original>
// kernel: tpu_custom_call.1
$region0: #{tpu_custom_call.1}
  #allocation0 [shape = 'u32[]', space=smem, size = 0x4, offset = 0x4, fixed_abs, tag = 'smem constant byte address 0x4 - core index']
  #allocation1 [shape = 'u32[144,128]{1,0:T(1,128)}', space=vmem, size = 0x12000, scoped, tag = 'internal scratch']
  %s0 = inlined_call_operand.hbm [shape: f32[8,16], index: 0, kind: input, shape index: {}]
  %s1 = inlined_call_operand.hbm [shape: f32[16,128], index: 1, kind: input, shape index: {}]
  %s2 = inlined_call_operand.vmem [shape: f32[1,128], index: 2, kind: input, shape index: {}]
  %s3 = inlined_call_operand.hbm [shape: f32[128,128], index: 3, kind: input, shape index: {}]
  %s4 = inlined_call_operand.vmem [shape: f32[1,128], index: 4, kind: input, shape index: {}]
  %s5 = inlined_call_operand.hbm [shape: f32[128,128], index: 5, kind: input, shape index: {}]
  %s6 = inlined_call_operand.vmem [shape: f32[1,128], index: 6, kind: input, shape index: {}]
  %s7 = inlined_call_operand.hbm [shape: f32[8,128], index: 7, kind: output, shape index: {}]
  %s8 = sld [smem:[#allocation0]]
  $region54: #{tpu_custom_call.1} parent=0
    _
  %s10 = ssub.s32 1, %s8
  %s11 = scalar_select 0, %s10, %s8
  $region1: #{tpu_custom_call.1} parent=0
    #allocation2 [shape = 'u8[4096]{0}', space=vmem, size = 0x1000, scoped, tag = 'input window, operand 0, single buffered']
    #allocation3 [shape = 's32[1]{0}', space=sflag, size = 0x4, scoped, tag = 'scoped memory for tpu_custom_call.1']
    #allocation4 [shape = 's32[1]{0}', space=sflag, size = 0x4, scoped, tag = 'scoped memory for tpu_custom_call.1']
    #allocation5 [shape = 'u8[8192]{0}', space=vmem, size = 0x2000, scoped, tag = 'input window, operand 1, single buffered']
    #allocation6 [shape = 's32[1]{0}', space=sflag, size = 0x4, scoped, tag = 'scoped memory for tpu_custom_call.1']
    #allocation7 [shape = 'u8[65536]{0}', space=vmem, size = 0x10000, scoped, tag = 'input window, operand 3, single buffered']
    #allocation8 [shape = 'u8[65536]{0}', space=vmem, size = 0x10000, scoped, tag = 'input window, operand 5, single buffered']
    #allocation9 [shape = 's32[1]{0}', space=sflag, size = 0x4, scoped, tag = 'scoped memory for tpu_custom_call.1']
    #allocation10 [shape = 'u8[4096]{0}', space=vmem, size = 0x1000, scoped, tag = 'output window, operand 0, single buffered']
    %12 = vsyncpa [#allocation3], 0
    %13 = vsyncpa [#allocation6], 0
    %14 = vsyncpa [#allocation9], 0
    %15 = vsyncpa [#allocation4], 0
    // Predicated region
    $region2: #{tpu_custom_call.1} parent=1 // pred_check
      _
    $region3: #{tpu_custom_call.1} parent=1 // pred_check_branch
      %17 = sbr.rel (0) target = $region5
    $region4: #{tpu_custom_call.1} parent=1 // pred_region
      %s19 = ssub.s32 128, 128
      %20 = vsyncadd [#allocation3], %s19
      %s22 = sshll.u32 [#allocation2], 4
      %s23 = int_to_ptr.vmem [resolvable:$true] %s22
      %25 = dma.hbm_to_vmem [thread:$0]  %s0, 128, %s23, [#allocation3]
    $region5: #{tpu_custom_call.1} parent=1 // pred_fallthru
      _
    // Predicated region
    $region6: #{tpu_custom_call.1} parent=1 // pred_check
      _
    $region7: #{tpu_custom_call.1} parent=1 // pred_check_branch
      %27 = sbr.rel (0) target = $region9
    $region8: #{tpu_custom_call.1} parent=1 // pred_region
      %s29 = ssub.s32 256, 256
      %30 = vsyncadd [#allocation6], %s29
      %s31 = sshll.u32 [#allocation5], 4
      %s32 = int_to_ptr.vmem [resolvable:$true] %s31
      %37 = dma.hbm_to_vmem [thread:$0]  %s1, 256, %s32, [#allocation6], 128, 128, 8
    $region9: #{tpu_custom_call.1} parent=1 // pred_fallthru
      _
    // Predicated region
    $region10: #{tpu_custom_call.1} parent=1 // pred_check
      _
    $region11: #{tpu_custom_call.1} parent=1 // pred_check_branch
      %39 = sbr.rel (0) target = $region13
    $region12: #{tpu_custom_call.1} parent=1 // pred_region
      _
    $region13: #{tpu_custom_call.1} parent=1 // pred_fallthru
      _
    // Predicated region
    $region14: #{tpu_custom_call.1} parent=1 // pred_check
      _
    $region15: #{tpu_custom_call.1} parent=1 // pred_check_branch
      %41 = sbr.rel (0) target = $region17
    $region16: #{tpu_custom_call.1} parent=1 // pred_region
      %s43 = ssub.s32 2048, 2048
      %44 = vsyncadd [#allocation6], %s43
      %s45 = sshll.u32 [#allocation7], 4
      %s46 = int_to_ptr.vmem [resolvable:$true] %s45
      %51 = dma.hbm_to_vmem [thread:$0]  %s3, 2048, %s46, [#allocation6], 128, 128, 8
    $region17: #{tpu_custom_call.1} parent=1 // pred_fallthru
      _
    // Predicated region
    $region18: #{tpu_custom_call.1} parent=1 // pred_check
      _
    $region19: #{tpu_custom_call.1} parent=1 // pred_check_branch
      %53 = sbr.rel (0) target = $region21
    $region20: #{tpu_custom_call.1} parent=1 // pred_region
      _
    $region21: #{tpu_custom_call.1} parent=1 // pred_fallthru
      _
    // Predicated region
    $region22: #{tpu_custom_call.1} parent=1 // pred_check
      _
    $region23: #{tpu_custom_call.1} parent=1 // pred_check_branch
      %55 = sbr.rel (0) target = $region25
    $region24: #{tpu_custom_call.1} parent=1 // pred_region
      %s57 = ssub.s32 2048, 2048
      %58 = vsyncadd [#allocation9], %s57
      %s59 = sshll.u32 [#allocation8], 4
      %s60 = int_to_ptr.vmem [resolvable:$true] %s59
      %65 = dma.hbm_to_vmem [thread:$0]  %s5, 2048, %s60, [#allocation9], 128, 128, 8
    $region25: #{tpu_custom_call.1} parent=1 // pred_fallthru
      _
    // Predicated region
    $region26: #{tpu_custom_call.1} parent=1 // pred_check
      _
    $region27: #{tpu_custom_call.1} parent=1 // pred_check_branch
      %67 = sbr.rel (0) target = $region29
    $region28: #{tpu_custom_call.1} parent=1 // pred_region
      _
    $region29: #{tpu_custom_call.1} parent=1 // pred_fallthru
      _
    // Predicated region
    $region30: #{tpu_custom_call.1} parent=1 // pred_check
      _
    $region31: #{tpu_custom_call.1} parent=1 // pred_check_branch
      %69 = sbr.rel (0) target = $region33
    $region32: #{tpu_custom_call.1} parent=1 // pred_region
      %70 = dma.done [#allocation3], 128
    $region33: #{tpu_custom_call.1} parent=1 // pred_fallthru
      _
    // Predicated region
    $region34: #{tpu_custom_call.1} parent=1 // pred_check
      _
    $region35: #{tpu_custom_call.1} parent=1 // pred_check_branch
      %72 = sbr.rel (0) target = $region37
    $region36: #{tpu_custom_call.1} parent=1 // pred_region
      %73 = dma.done [#allocation6], 256
    $region37: #{tpu_custom_call.1} parent=1 // pred_fallthru
      _
    // Predicated region
    $region38: #{tpu_custom_call.1} parent=1 // pred_check
      _
    $region39: #{tpu_custom_call.1} parent=1 // pred_check_branch
      %75 = sbr.rel (0) target = $region41
    $region40: #{tpu_custom_call.1} parent=1 // pred_region
      %76 = dma.done [#allocation6], 2048
    $region41: #{tpu_custom_call.1} parent=1 // pred_fallthru
      _
    // Predicated region
    $region42: #{tpu_custom_call.1} parent=1 // pred_check
      _
    $region43: #{tpu_custom_call.1} parent=1 // pred_check_branch
      %78 = sbr.rel (0) target = $region45
    $region44: #{tpu_custom_call.1} parent=1 // pred_region
      %79 = dma.done [#allocation9], 2048
    $region45: #{tpu_custom_call.1} parent=1 // pred_fallthru
      _
    %v80 = vld [vmem:[#allocation2] sm:$0xff]
    %v81 = vld [vmem:[#allocation5] sm:$0xff]
    %v82 = vld [vmem:[#allocation5 + $0x8] sm:$0xff]
    %v83 = vld [vmem:[%s2] sm:$0x1]
    %v85 = vlaneseq
    %v86 = vshrl.u32 %v85, 7
    %v87 = vsub.s32 0, %v86
    %v88 = vrot.slane %v83, %v87
    %vm90 = vcmask 130048
    %v92 = vsel %vm90, %v80, 0
    %94 = vmatprep.subr.mxu0 0.0
    %95 = vmatpush1.msra.mxu0 %v81
    %96 = vmatprep.subr.mxu0 0.0
    %97 = vmatpush1.msra.mxu0 %v82
    %98 = vmatprep.subr.mxu0 0.0
    %99 = vmatpush1.msra.mxu0 0.0
    %100 = vmatprep.subr.mxu0 0.0
    %101 = vmatpush1.msra.mxu0 0.0
    %102 = vmatprep.subr.mxu0 0.0
    %103 = vmatpush1.msra.mxu0 0.0
    %104 = vmatprep.subr.mxu0 0.0
    %105 = vmatpush1.msra.mxu0 0.0
    %106 = vmatprep.subr.mxu0 0.0
    %107 = vmatpush1.msra.mxu0 0.0
    %108 = vmatprep.subr.mxu0 0.0
    %109 = vmatpush1.msra.mxu0 0.0
    %110 = vmatprep.subr.mxu0 0.0
    %111 = vmatpush1.msra.mxu0 0.0
    %112 = vmatprep.subr.mxu0 0.0
    %113 = vmatpush1.msra.mxu0 0.0
    %114 = vmatprep.subr.mxu0 0.0
    %115 = vmatpush1.msra.mxu0 0.0
    %116 = vmatprep.subr.mxu0 0.0
    %117 = vmatpush1.msra.mxu0 0.0
    %118 = vmatprep.subr.mxu0 0.0
    %119 = vmatpush1.msra.mxu0 0.0
    %120 = vmatprep.subr.mxu0 0.0
    %121 = vmatpush1.msra.mxu0 0.0
    %122 = vmatprep.subr.mxu0 0.0
    %123 = vmatpush1.msra.mxu0 0.0
    %124 = vmatprep.subr.mxu0 0.0
    %125 = vmatpush1.msra.mxu0 0.0
    %126 = vmatprep.subr.mxu0 0.0
    %127 = vmatpush1.msra.mxu0 0.0
    %128 = vmatprep.subr.mxu0 0.0
    %129 = vmatpush1.msra.mxu0 0.0
    %130 = vmatprep.subr.mxu0 0.0
    %131 = vmatpush1.msra.mxu0 0.0
    %132 = vmatprep.subr.mxu0 0.0
    %133 = vmatpush1.msra.mxu0 0.0
    %134 = vmatprep.subr.mxu0 0.0
    %135 = vmatpush1.msra.mxu0 0.0
    %136 = vmatprep.subr.mxu0 0.0
    %137 = vmatpush1.msra.mxu0 0.0
    %138 = vmatprep.subr.mxu0 0.0
    %139 = vmatpush1.msra.mxu0 0.0
    %140 = vmatprep.subr.mxu0 0.0
    %141 = vmatpush1.msra.mxu0 0.0
    %142 = vmatprep.subr.mxu0 0.0
    %143 = vmatpush1.msra.mxu0 0.0
    %144 = vmatprep.subr.mxu0 0.0
    %145 = vmatpush1.msra.mxu0 0.0
    %146 = vmatprep.subr.mxu0 0.0
    %147 = vmatpush1.msra.mxu0 0.0
    %148 = vmatprep.subr.mxu0 0.0
    %149 = vmatpush1.msra.mxu0 0.0
    %150 = vmatprep.subr.mxu0 0.0
    %151 = vmatpush1.msra.mxu0 0.0
    %152 = vmatprep.subr.mxu0 0.0
    %153 = vmatpush1.msra.mxu0 0.0
    %154 = vmatprep.subr.mxu0 0.0
    %155 = vmatpush1.msra.mxu0 0.0
    %156 = vmatprep.subr.mxu0 0.0
    %157 = vmatpush1.msra.mxu0 0.0
    %158 = vmatprep.mubr.f32.mxu0 0.0
    %159 = vmatmul.mubr.f32.gmra.mrb[0].mxu0 %v92
    %v160 = vpop.f32.mrb[0].mxu0
    %v161 = vadd.f32 %v88, %v160
    %v162 = vpop.f32.mrb[0].mxu0
    %163 = vdwg.mxu0
    %v164 = vmul.f32 %v161, 0.5
    %v165 = vtanh.pop %v164
    %v166 = vadd.f32 %v165, 1.0
    %v167 = vmul.f32 %v166, 0.5
    %v168 = vld [vmem:[#allocation7] sm:$0xff]
    %v169 = vld [vmem:[#allocation7 + $0x8] sm:$0xff]
    %v170 = vld [vmem:[#allocation7 + $0x10] sm:$0xff]
    %v171 = vld [vmem:[#allocation7 + $0x18] sm:$0xff]
    %v172 = vld [vmem:[#allocation7 + $0x20] sm:$0xff]
    %v173 = vld [vmem:[#allocation7 + $0x28] sm:$0xff]
    %v174 = vld [vmem:[#allocation7 + $0x30] sm:$0xff]
    %v175 = vld [vmem:[#allocation7 + $0x38] sm:$0xff]
    %v176 = vld [vmem:[#allocation7 + $0x40] sm:$0xff]
    %v177 = vld [vmem:[#allocation7 + $0x48] sm:$0xff]
    %v178 = vld [vmem:[#allocation7 + $0x50] sm:$0xff]
    %v179 = vld [vmem:[#allocation7 + $0x58] sm:$0xff]
    %v180 = vld [vmem:[#allocation7 + $0x60] sm:$0xff]
    %v181 = vld [vmem:[#allocation7 + $0x68] sm:$0xff]
    %v182 = vld [vmem:[#allocation7 + $0x70] sm:$0xff]
    %v183 = vld [vmem:[#allocation7 + $0x78] sm:$0xff]
    %v184 = vld [vmem:[%s4] sm:$0x1]
    %v186 = vlaneseq
    %v187 = vshrl.u32 %v186, 7
    %v188 = vsub.s32 0, %v187
    %v189 = vrot.slane %v184, %v188
    %191 = vmatprep.subr.mxu0 0.0
    %192 = vmatpush1.msra.mxu0 %v168
    %193 = vmatprep.subr.mxu0 0.0
    %194 = vmatpush1.msra.mxu0 %v169
    %195 = vmatprep.subr.mxu0 0.0
    %196 = vmatpush1.msra.mxu0 %v170
    %197 = vmatprep.subr.mxu0 0.0
    %198 = vmatpush1.msra.mxu0 %v171
    %199 = vmatprep.subr.mxu0 0.0
    %200 = vmatpush1.msra.mxu0 %v172
    %201 = vmatprep.subr.mxu0 0.0
    %202 = vmatpush1.msra.mxu0 %v173
    %203 = vmatprep.subr.mxu0 0.0
    %204 = vmatpush1.msra.mxu0 %v174
    %205 = vmatprep.subr.mxu0 0.0
    %206 = vmatpush1.msra.mxu0 %v175
    %207 = vmatprep.subr.mxu0 0.0
    %208 = vmatpush1.msra.mxu0 %v176
    %209 = vmatprep.subr.mxu0 0.0
    %210 = vmatpush1.msra.mxu0 %v177
    %211 = vmatprep.subr.mxu0 0.0
    %212 = vmatpush1.msra.mxu0 %v178
    %213 = vmatprep.subr.mxu0 0.0
    %214 = vmatpush1.msra.mxu0 %v179
    %215 = vmatprep.subr.mxu0 0.0
    %216 = vmatpush1.msra.mxu0 %v180
    %217 = vmatprep.subr.mxu0 0.0
    %218 = vmatpush1.msra.mxu0 %v181
    %219 = vmatprep.subr.mxu0 0.0
    %220 = vmatpush1.msra.mxu0 %v182
    %221 = vmatprep.subr.mxu0 0.0
    %222 = vmatpush1.msra.mxu0 %v183
    %223 = vmatprep.subr.mxu0 0.0
    %224 = vmatpush1.msra.mxu0 0.0
    %225 = vmatprep.subr.mxu0 0.0
    %226 = vmatpush1.msra.mxu0 0.0
    %227 = vmatprep.subr.mxu0 0.0
    %228 = vmatpush1.msra.mxu0 0.0
    %229 = vmatprep.subr.mxu0 0.0
    %230 = vmatpush1.msra.mxu0 0.0
    %231 = vmatprep.subr.mxu0 0.0
    %232 = vmatpush1.msra.mxu0 0.0
    %233 = vmatprep.subr.mxu0 0.0
    %234 = vmatpush1.msra.mxu0 0.0
    %235 = vmatprep.subr.mxu0 0.0
    %236 = vmatpush1.msra.mxu0 0.0
    %237 = vmatprep.subr.mxu0 0.0
    %238 = vmatpush1.msra.mxu0 0.0
    %239 = vmatprep.subr.mxu0 0.0
    %240 = vmatpush1.msra.mxu0 0.0
    %241 = vmatprep.subr.mxu0 0.0
    %242 = vmatpush1.msra.mxu0 0.0
    %243 = vmatprep.subr.mxu0 0.0
    %244 = vmatpush1.msra.mxu0 0.0
    %245 = vmatprep.subr.mxu0 0.0
    %246 = vmatpush1.msra.mxu0 0.0
    %247 = vmatprep.subr.mxu0 0.0
    %248 = vmatpush1.msra.mxu0 0.0
    %249 = vmatprep.subr.mxu0 0.0
    %250 = vmatpush1.msra.mxu0 0.0
    %251 = vmatprep.subr.mxu0 0.0
    %252 = vmatpush1.msra.mxu0 0.0
    %253 = vmatprep.subr.mxu0 0.0
    %254 = vmatpush1.msra.mxu0 0.0
    %255 = vmatprep.mubr.f32.mxu0 0.0
    %256 = vmatmul.mubr.f32.gmra.mrb[0].mxu0 %v167
    %v257 = vpop.f32.mrb[0].mxu0
    %v258 = vadd.f32 %v189, %v257
    %v259 = vpop.f32.mrb[0].mxu0
    %260 = vdwg.mxu0
    %v261 = vmul.f32 %v258, 0.5
    %v262 = vtanh.pop %v261
    %v263 = vadd.f32 %v262, 1.0
    %v264 = vmul.f32 %v263, 0.5
    %v265 = vld [vmem:[#allocation8] sm:$0xff]
    %v266 = vld [vmem:[#allocation8 + $0x8] sm:$0xff]
    %v267 = vld [vmem:[#allocation8 + $0x10] sm:$0xff]
    %v268 = vld [vmem:[#allocation8 + $0x18] sm:$0xff]
    %v269 = vld [vmem:[#allocation8 + $0x20] sm:$0xff]
    %v270 = vld [vmem:[#allocation8 + $0x28] sm:$0xff]
    %v271 = vld [vmem:[#allocation8 + $0x30] sm:$0xff]
    %v272 = vld [vmem:[#allocation8 + $0x38] sm:$0xff]
    %v273 = vld [vmem:[#allocation8 + $0x40] sm:$0xff]
    %v274 = vld [vmem:[#allocation8 + $0x48] sm:$0xff]
    %v275 = vld [vmem:[#allocation8 + $0x50] sm:$0xff]
    %v276 = vld [vmem:[#allocation8 + $0x58] sm:$0xff]
    %v277 = vld [vmem:[#allocation8 + $0x60] sm:$0xff]
    %v278 = vld [vmem:[#allocation8 + $0x68] sm:$0xff]
    %v279 = vld [vmem:[#allocation8 + $0x70] sm:$0xff]
    %v280 = vld [vmem:[#allocation8 + $0x78] sm:$0xff]
    %v281 = vld [vmem:[%s6] sm:$0x1]
    %v283 = vlaneseq
    %v284 = vshrl.u32 %v283, 7
    %v285 = vsub.s32 0, %v284
    %v286 = vrot.slane %v281, %v285
    %288 = vmatprep.subr.mxu0 0.0
    %289 = vmatpush1.msra.mxu0 %v265
    %290 = vmatprep.subr.mxu0 0.0
    %291 = vmatpush1.msra.mxu0 %v266
    %292 = vmatprep.subr.mxu0 0.0
    %293 = vmatpush1.msra.mxu0 %v267
    %294 = vmatprep.subr.mxu0 0.0
    %295 = vmatpush1.msra.mxu0 %v268
    %296 = vmatprep.subr.mxu0 0.0
    %297 = vmatpush1.msra.mxu0 %v269
    %298 = vmatprep.subr.mxu0 0.0
    %299 = vmatpush1.msra.mxu0 %v270
    %300 = vmatprep.subr.mxu0 0.0
    %301 = vmatpush1.msra.mxu0 %v271
    %302 = vmatprep.subr.mxu0 0.0
    %303 = vmatpush1.msra.mxu0 %v272
    %304 = vmatprep.subr.mxu0 0.0
    %305 = vmatpush1.msra.mxu0 %v273
    %306 = vmatprep.subr.mxu0 0.0
    %307 = vmatpush1.msra.mxu0 %v274
    %308 = vmatprep.subr.mxu0 0.0
    %309 = vmatpush1.msra.mxu0 %v275
    %310 = vmatprep.subr.mxu0 0.0
    %311 = vmatpush1.msra.mxu0 %v276
    %312 = vmatprep.subr.mxu0 0.0
    %313 = vmatpush1.msra.mxu0 %v277
    %314 = vmatprep.subr.mxu0 0.0
    %315 = vmatpush1.msra.mxu0 %v278
    %316 = vmatprep.subr.mxu0 0.0
    %317 = vmatpush1.msra.mxu0 %v279
    %318 = vmatprep.subr.mxu0 0.0
    %319 = vmatpush1.msra.mxu0 %v280
    %320 = vmatprep.subr.mxu0 0.0
    %321 = vmatpush1.msra.mxu0 0.0
    %322 = vmatprep.subr.mxu0 0.0
    %323 = vmatpush1.msra.mxu0 0.0
    %324 = vmatprep.subr.mxu0 0.0
    %325 = vmatpush1.msra.mxu0 0.0
    %326 = vmatprep.subr.mxu0 0.0
    %327 = vmatpush1.msra.mxu0 0.0
    %328 = vmatprep.subr.mxu0 0.0
    %329 = vmatpush1.msra.mxu0 0.0
    %330 = vmatprep.subr.mxu0 0.0
    %331 = vmatpush1.msra.mxu0 0.0
    %332 = vmatprep.subr.mxu0 0.0
    %333 = vmatpush1.msra.mxu0 0.0
    %334 = vmatprep.subr.mxu0 0.0
    %335 = vmatpush1.msra.mxu0 0.0
    %336 = vmatprep.subr.mxu0 0.0
    %337 = vmatpush1.msra.mxu0 0.0
    %338 = vmatprep.subr.mxu0 0.0
    %339 = vmatpush1.msra.mxu0 0.0
    %340 = vmatprep.subr.mxu0 0.0
    %341 = vmatpush1.msra.mxu0 0.0
    %342 = vmatprep.subr.mxu0 0.0
    %343 = vmatpush1.msra.mxu0 0.0
    %344 = vmatprep.subr.mxu0 0.0
    %345 = vmatpush1.msra.mxu0 0.0
    %346 = vmatprep.subr.mxu0 0.0
    %347 = vmatpush1.msra.mxu0 0.0
    %348 = vmatprep.subr.mxu0 0.0
    %349 = vmatpush1.msra.mxu0 0.0
    %350 = vmatprep.subr.mxu0 0.0
    %351 = vmatpush1.msra.mxu0 0.0
    %352 = vmatprep.mubr.f32.mxu0 0.0
    %353 = vmatmul.mubr.f32.gmra.mrb[0].mxu0 %v264
    %v354 = vpop.f32.mrb[0].mxu0
    %v355 = vadd.f32 %v286, %v354
    %v356 = vpop.f32.mrb[0].mxu0
    %357 = vdwg.mxu0
    %v358 = vmul.f32 %v355, 0.5
    %v359 = vtanh.pop %v358
    %v360 = vadd.f32 %v359, 1.0
    %v361 = vmul.f32 %v360, 0.5
    %362 = vst [vmem:[#allocation10] sm:$0xff] %v361
    // Predicated region
    $region46: #{tpu_custom_call.1} parent=1 // pred_check
      _
    $region47: #{tpu_custom_call.1} parent=1 // pred_check_branch
      %364 = sbr.rel (0) target = $region49
    $region48: #{tpu_custom_call.1} parent=1 // pred_region
      %s366 = ssub.s32 128, 128
      %367 = vsyncadd [#allocation4], %s366
      %s369 = sshll.u32 [#allocation10], 4
      %s370 = int_to_ptr.vmem [resolvable:$true] %s369
      %372 = dma.vmem_to_hbm [thread:$0]  %s370, 128, %s7, [#allocation4]
    $region49: #{tpu_custom_call.1} parent=1 // pred_fallthru
      _
    // Predicated region
    $region50: #{tpu_custom_call.1} parent=1 // pred_check
      _
    $region51: #{tpu_custom_call.1} parent=1 // pred_check_branch
      %374 = sbr.rel (0) target = $region53
    $region52: #{tpu_custom_call.1} parent=1 // pred_region
      %375 = dma.done [#allocation4], 128
    $region53: #{tpu_custom_call.1} parent=1 // pred_fallthru
      _
    %376 = vsyncpa [#allocation3], 1
    %377 = vsyncpa [#allocation6], 1
    %378 = vsyncpa [#allocation9], 1
    %379 = vsyncpa [#allocation4], 1

</llo_original>
